<compile_context>
chip_gen: v7x
topology: tpu7x:2x2x1
jax: 0.10.0
libtpu: 0.0.40
codegen_flags: <defaults>
</compile_context>

<pallas_src>
import functools

import jax
import jax.numpy as jnp
import numpy as np
from jax.experimental import pallas as pl
from jax.experimental.pallas import tpu as pltpu


def convlstm_kernel(patches_ref, w_ref, b_ref, c_ref, h_next_ref, c_next_ref,
                    *, hd):
    # patches_ref : (1, K*K*Cin, H*W)  bf16  im2col of concat([x, h]) (padded)
    # w_ref       : (4*hd, K*K*Cin)    bf16  OIHW-flattened conv weight
    # b_ref       : (4*hd, 1)          f32   conv bias (broadcast over lanes)
    # c_ref       : (1, hd, H*W)       f32   previous cell state
    # outputs     : (1, hd, H*W)             h_next, c_next

    # Single fused GEMM on the MXU, fp32 accumulation; bias added in one pass.
    acc = jnp.dot(w_ref[...], patches_ref[0],
                  preferred_element_type=jnp.float32)          # (4*hd, H*W)
    acc = acc + b_ref[...]

    # Gates (PyTorch chunk order i, f, o, g along the output-channel rows).
    # Fused sigmoid over the i/f/o slab; slices are sublane-aligned (hd = 8k).
    ifo = jax.nn.sigmoid(acc[:3 * hd, :])
    i = ifo[0 * hd:1 * hd, :]
    f = ifo[1 * hd:2 * hd, :]
    o = ifo[2 * hd:3 * hd, :]
    g = jnp.tanh(acc[3 * hd:4 * hd, :])

    c_prev = c_ref[0].astype(jnp.float32)                      # (hd, H*W)
    c_next = f * c_prev + i * g
    h_next = o * jnp.tanh(c_next)

    h_next_ref[0] = h_next.astype(h_next_ref.dtype)
    c_next_ref[0] = c_next.astype(c_next_ref.dtype)


def convlstm_cell(x, h, c, weight, bias, kernel_size):
    """ConvLSTMCell.forward.  x:(B,Cx,H,W)  h,c:(B,hd,H,W)  -> (h_next, c_next) NCHW."""
    B, Cx, H, W = x.shape
    hd = h.shape[1]
    K = kernel_size
    assert K % 2 == 1, "only odd kernel_size gives 'same' output shape (as in the torch module)"
    p = K // 2
    Cin = Cx + hd
    HW = H * W
    KKCin = K * K * Cin

    # ---- plain-JAX glue: channels-first im2col (XLA handles this well) ----
    comb = jnp.concatenate([x, h], axis=1)                          # (B, Cin, H, W)
    comb_p = jnp.pad(comb, ((0, 0), (0, 0), (p, p), (p, p)))        # (B, Cin, Hp, Wp)
    cols = [comb_p[:, :, kh:kh + H, kw:kw + W]                      # (B, Cin, H, W) each
            for kh in range(K) for kw in range(K)]
    # axis order (cin, kh*K+kw) matches weight.reshape(4*hd, Cin*K*K) flattening.
    patches = jnp.stack(cols, axis=2).reshape(B, KKCin, HW)
    patches = patches.astype(jnp.bfloat16)                          # bf16 MXU operand

    w_flat = weight.reshape(4 * hd, KKCin).astype(jnp.bfloat16)     # bf16 MXU operand
    b2 = bias.reshape(4 * hd, 1).astype(jnp.float32)
    c_flat = c.reshape(B, hd, HW)

    kernel = functools.partial(convlstm_kernel, hd=hd)

    h_next, c_next = pl.pallas_call(
        kernel,
        out_shape=(jax.ShapeDtypeStruct((B, hd, HW), x.dtype),
                   jax.ShapeDtypeStruct((B, hd, HW), x.dtype)),
        grid=(B,),
        in_specs=[
            pl.BlockSpec((1, KKCin, HW), lambda b: (b, 0, 0)),
            pl.BlockSpec((4 * hd, KKCin), lambda b: (0, 0)),
            pl.BlockSpec((4 * hd, 1), lambda b: (0, 0)),
            pl.BlockSpec((1, hd, HW), lambda b: (b, 0, 0)),
        ],
        out_specs=(pl.BlockSpec((1, hd, HW), lambda b: (b, 0, 0)),
                   pl.BlockSpec((1, hd, HW), lambda b: (b, 0, 0))),
        compiler_params=pltpu.CompilerParams(
            dimension_semantics=("parallel",),
            vmem_limit_bytes=64 * 1024 * 1024),
    )(patches, w_flat, b2, c_flat)

    # Back to PyTorch NCHW convention (pure reshape — no transpose needed).
    return h_next.reshape(B, hd, H, W), c_next.reshape(B, hd, H, W)


def convlstm_cell_ref(x, h, c, weight, bias, kernel_size):
    """Pure-JAX reference matching torch semantics (NCHW conv)."""
    p = kernel_size // 2
    comb = jnp.concatenate([x, h], axis=1)
    conv = jax.lax.conv_general_dilated(
        comb, weight, window_strides=(1, 1), padding=[(p, p), (p, p)],
        dimension_numbers=("NCHW", "OIHW", "NCHW"))
    conv = conv + bias[None, :, None, None]
    hd = h.shape[1]
    cc_i, cc_f, cc_o, cc_g = (conv[:, k * hd:(k + 1) * hd] for k in range(4))
    i, f, o = jax.nn.sigmoid(cc_i), jax.nn.sigmoid(cc_f), jax.nn.sigmoid(cc_o)
    g = jnp.tanh(cc_g)
    c_next = f * c + i * g
    h_next = o * jnp.tanh(c_next)
    return h_next, c_next


if __name__ == "__main__":
    # Module hyper-parameters (small, consistent with the forward).
    B, input_dim, hidden_dim, H, W, K = 2, 4, 8, 16, 16, 3

    key = jax.random.PRNGKey(0)
    kx, kh, kc, kw, kb = jax.random.split(key, 5)
    x = jax.random.normal(kx, (B, input_dim, H, W), jnp.float32)
    h = jax.random.normal(kh, (B, hidden_dim, H, W), jnp.float32)
    c = jax.random.normal(kc, (B, hidden_dim, H, W), jnp.float32)

    # Deterministic parameter init (shapes as in nn.Conv2d(input+hidden, 4*hidden, K)).
    fan_in = (input_dim + hidden_dim) * K * K
    weight = jax.random.normal(
        kw, (4 * hidden_dim, input_dim + hidden_dim, K, K), jnp.float32) / np.sqrt(fan_in)
    bias = jax.random.normal(kb, (4 * hidden_dim,), jnp.float32) * 0.1

    h_next, c_next = jax.jit(
        functools.partial(convlstm_cell, kernel_size=K))(x, h, c, weight, bias)
    jax.block_until_ready((h_next, c_next))

    h_ref, c_ref = convlstm_cell_ref(x, h, c, weight, bias, K)
    np.testing.assert_allclose(np.asarray(h_next), np.asarray(h_ref), rtol=2e-2, atol=2e-2)
    np.testing.assert_allclose(np.asarray(c_next), np.asarray(c_ref), rtol=2e-2, atol=2e-2)

    print("KERNEL_OK")
</pallas_src>

<mosaic_0001>
module attributes {stable_mosaic.version = 11 : i64} {
  func.func @convlstm_kernel(%arg0: i32, %arg1: memref<1x108x256xbf16, #tpu.memory_space<vmem>>, %arg2: memref<32x108xbf16, #tpu.memory_space<vmem>>, %arg3: memref<32x1xf32, #tpu.memory_space<vmem>>, %arg4: memref<1x8x256xf32, #tpu.memory_space<vmem>>, %arg5: memref<1x8x256xf32, #tpu.memory_space<vmem>>, %arg6: memref<1x8x256xf32, #tpu.memory_space<vmem>>) attributes {dimension_semantics = [#tpu.dimension_semantics<parallel>], iteration_bounds = array<i64: 2>, scalar_prefetch = 0 : i64, scratch_operands = 0 : i64, tpu.core_type = #tpu.core_type<tc>, window_params = [{transform_indices = @transform_0, window_bounds = array<i64: 1, 108, 256>}, {pipeline_mode = #tpu.pipeline_mode<synchronous>, transform_indices = @transform_1, window_bounds = array<i64: 32, 108>}, {pipeline_mode = #tpu.pipeline_mode<synchronous>, transform_indices = @transform_2, window_bounds = array<i64: 32, 1>}, {transform_indices = @transform_3, window_bounds = array<i64: 1, 8, 256>}, {transform_indices = @transform_4, window_bounds = array<i64: 1, 8, 256>}, {transform_indices = @transform_5, window_bounds = array<i64: 1, 8, 256>}]} {
    %c0 = arith.constant 0 : index
    %c0_0 = arith.constant 0 : index
    %0 = vector.load %arg2[%c0, %c0_0] : memref<32x108xbf16, #tpu.memory_space<vmem>>, vector<32x108xbf16>
    %c0_1 = arith.constant 0 : index
    %c0_2 = arith.constant 0 : index
    %c0_3 = arith.constant 0 : index
    %1 = vector.load %arg1[%c0_1, %c0_2, %c0_3] : memref<1x108x256xbf16, #tpu.memory_space<vmem>>, vector<1x108x256xbf16>
    %2 = vector.shape_cast %1 : vector<1x108x256xbf16> to vector<108x256xbf16>
    %cst = arith.constant dense<0.000000e+00> : vector<32x256xf32>
    %3 = tpu.matmul %0, %2, %cst {dimension_numbers = #tpu.dot_dimension_numbers<[1], [0], [0], [1], [0, 0, 1, 1], [], []>} : vector<32x108xbf16>, vector<108x256xbf16>, vector<32x256xf32> -> vector<32x256xf32>
    %c0_4 = arith.constant 0 : index
    %c0_5 = arith.constant 0 : index
    %4 = vector.load %arg3[%c0_4, %c0_5] : memref<32x1xf32, #tpu.memory_space<vmem>>, vector<32x1xf32>
    %5 = vector.broadcast %4 : vector<32x1xf32> to vector<32x256xf32>
    %6 = arith.addf %3, %5 : vector<32x256xf32>
    %7 = vector.extract_strided_slice %6 {offsets = [0, 0], sizes = [24, 256], strides = [1, 1]} : vector<32x256xf32> to vector<24x256xf32>
    %8 = arith.negf %7 : vector<24x256xf32>
    %9 = math.exp %8 : vector<24x256xf32>
    %cst_6 = arith.constant 1.000000e+00 : f32
    %10 = vector.broadcast %cst_6 : f32 to vector<24x256xf32>
    %11 = arith.addf %10, %9 : vector<24x256xf32>
    %12 = arith.divf %10, %11 : vector<24x256xf32>
    %13 = vector.extract_strided_slice %12 {offsets = [0, 0], sizes = [8, 256], strides = [1, 1]} : vector<24x256xf32> to vector<8x256xf32>
    %14 = vector.extract_strided_slice %12 {offsets = [8, 0], sizes = [8, 256], strides = [1, 1]} : vector<24x256xf32> to vector<8x256xf32>
    %15 = vector.extract_strided_slice %12 {offsets = [16, 0], sizes = [8, 256], strides = [1, 1]} : vector<24x256xf32> to vector<8x256xf32>
    %16 = vector.extract_strided_slice %6 {offsets = [24, 0], sizes = [8, 256], strides = [1, 1]} : vector<32x256xf32> to vector<8x256xf32>
    %17 = math.tanh %16 : vector<8x256xf32>
    %c0_7 = arith.constant 0 : index
    %c0_8 = arith.constant 0 : index
    %c0_9 = arith.constant 0 : index
    %18 = vector.load %arg4[%c0_7, %c0_8, %c0_9] : memref<1x8x256xf32, #tpu.memory_space<vmem>>, vector<1x8x256xf32>
    %19 = vector.shape_cast %18 : vector<1x8x256xf32> to vector<8x256xf32>
    %20 = arith.mulf %14, %19 : vector<8x256xf32>
    %21 = arith.mulf %13, %17 : vector<8x256xf32>
    %22 = arith.addf %20, %21 : vector<8x256xf32>
    %23 = math.tanh %22 : vector<8x256xf32>
    %24 = arith.mulf %15, %23 : vector<8x256xf32>
    %c0_10 = arith.constant 0 : index
    %c0_11 = arith.constant 0 : index
    %c0_12 = arith.constant 0 : index
    %25 = vector.load %arg5[%c0_10, %c0_11, %c0_12] : memref<1x8x256xf32, #tpu.memory_space<vmem>>, vector<1x8x256xf32>
    %26 = vector.shape_cast %25 : vector<1x8x256xf32> to vector<8x256xf32>
    %27 = vector.shape_cast %24 : vector<8x256xf32> to vector<1x8x256xf32>
    tpu.vector_store %arg5[%c0_10, %c0_11, %c0_12], %27 {strides = array<i32>} : memref<1x8x256xf32, #tpu.memory_space<vmem>>, vector<1x8x256xf32>,
    %c0_13 = arith.constant 0 : index
    %c0_14 = arith.constant 0 : index
    %c0_15 = arith.constant 0 : index
    %28 = vector.load %arg6[%c0_13, %c0_14, %c0_15] : memref<1x8x256xf32, #tpu.memory_space<vmem>>, vector<1x8x256xf32>
    %29 = vector.shape_cast %28 : vector<1x8x256xf32> to vector<8x256xf32>
    %30 = vector.shape_cast %22 : vector<8x256xf32> to vector<1x8x256xf32>
    tpu.vector_store %arg6[%c0_13, %c0_14, %c0_15], %30 {strides = array<i32>} : memref<1x8x256xf32, #tpu.memory_space<vmem>>, vector<1x8x256xf32>,
    return
  }
  func.func @transform_0(%arg0: i32) -> (i32, i32, i32) {
    %c0_i32 = arith.constant 0 : i32
    %c0_i32_0 = arith.constant 0 : i32
    %c0_i32_1 = arith.constant 0 : i32
    return %arg0, %c0_i32, %c0_i32_0 : i32, i32, i32
  }
  func.func @transform_1(%arg0: i32) -> (i32, i32) {
    %c0_i32 = arith.constant 0 : i32
    %c0_i32_0 = arith.constant 0 : i32
    %c0_i32_1 = arith.constant 0 : i32
    return %c0_i32, %c0_i32_0 : i32, i32
  }
  func.func @transform_2(%arg0: i32) -> (i32, i32) {
    %c0_i32 = arith.constant 0 : i32
    %c0_i32_0 = arith.constant 0 : i32
    %c0_i32_1 = arith.constant 0 : i32
    return %c0_i32, %c0_i32_0 : i32, i32
  }
  func.func @transform_3(%arg0: i32) -> (i32, i32, i32) {
    %c0_i32 = arith.constant 0 : i32
    %c0_i32_0 = arith.constant 0 : i32
    %c0_i32_1 = arith.constant 0 : i32
    return %arg0, %c0_i32, %c0_i32_0 : i32, i32, i32
  }
  func.func @transform_4(%arg0: i32) -> (i32, i32, i32) {
    %c0_i32 = arith.constant 0 : i32
    %c0_i32_0 = arith.constant 0 : i32
    %c0_i32_1 = arith.constant 0 : i32
    return %arg0, %c0_i32, %c0_i32_0 : i32, i32, i32
  }
  func.func @transform_5(%arg0: i32) -> (i32, i32, i32) {
    %c0_i32 = arith.constant 0 : i32
    %c0_i32_0 = arith.constant 0 : i32
    %c0_i32_1 = arith.constant 0 : i32
    return %arg0, %c0_i32, %c0_i32_0 : i32, i32, i32
  }
}

</mosaic_0001>

<llo_original>
// kernel: convlstm_cell.1
$region0: #{convlstm_cell.1}
  #allocation0 [shape = 'u32[]', space=smem, size = 0x4, offset = 0x4, fixed_abs, tag = 'smem constant byte address 0x4 - core index']
  #allocation1 [shape = 'u32[144,128]{1,0:T(1,128)}', space=vmem, size = 0x12000, scoped, tag = 'internal scratch']
  %s0 = inlined_call_operand.hbm [shape: bf16[2,108,256], index: 0, kind: input, shape index: {}]
  %s1 = inlined_call_operand.hbm [shape: bf16[32,108], index: 1, kind: input, shape index: {}]
  %s2 = inlined_call_operand.hbm [shape: f32[32,1], index: 2, kind: input, shape index: {}]
  %s3 = inlined_call_operand.hbm [shape: f32[2,8,256], index: 3, kind: input, shape index: {}]
  %s4 = inlined_call_operand.hbm [shape: f32[2,8,256], index: 4, kind: output, shape index: {0}]
  %s5 = inlined_call_operand.hbm [shape: f32[2,8,256], index: 5, kind: output, shape index: {1}]
  %6 = xla_tuple %s4, %s5
  %s7 = sld [smem:[#allocation0]]
  $region73: #{convlstm_cell.1} parent=0
    _
  %s9 = ssub.s32 1, %s7
  %s10 = scalar_select 0, %s9, %s7
  $region1: #{convlstm_cell.1} parent=0
    #allocation2 [shape = 'u8[114688]{0}', space=vmem, size = 0x1c000, scoped, tag = 'input window, operand 0']
    #allocation3 [shape = 's32[2]{0}', space=sflag, size = 0x8, scoped, tag = 'scoped memory for convlstm_cell.1']
    #allocation4 [shape = 's32[2]{0}', space=sflag, size = 0x8, scoped, tag = 'scoped memory for convlstm_cell.1']
    #allocation5 [shape = 'u8[8192]{0}', space=vmem, size = 0x2000, scoped, tag = 'input window, operand 1, single buffered']
    #allocation6 [shape = 's32[1]{0}', space=sflag, size = 0x4, scoped, tag = 'scoped memory for convlstm_cell.1']
    #allocation7 [shape = 'u8[16384]{0}', space=vmem, size = 0x4000, scoped, tag = 'input window, operand 2, single buffered']
    #allocation8 [shape = 'u8[16384]{0}', space=vmem, size = 0x4000, scoped, tag = 'input window, operand 3']
    #allocation9 [shape = 's32[2]{0}', space=sflag, size = 0x8, scoped, tag = 'scoped memory for convlstm_cell.1']
    #allocation10 [shape = 'u8[16384]{0}', space=vmem, size = 0x4000, scoped, tag = 'output window, operand 0']
    #allocation11 [shape = 'u8[16384]{0}', space=vmem, size = 0x4000, scoped, tag = 'output window, operand 1']
    #allocation12 [shape = 's32[2]{0}', space=sflag, size = 0x8, scoped, tag = 'scoped memory for convlstm_cell.1']
    %11 = vsyncpa [#allocation3], 0
    %s12 = scalar_lea.sflag [#allocation3], 1
    %13 = vsyncpa %s12, 0
    %14 = vsyncpa [#allocation6], 0
    %15 = vsyncpa [#allocation9], 0
    %s16 = scalar_lea.sflag [#allocation9], 1
    %17 = vsyncpa %s16, 0
    %18 = vsyncpa [#allocation4], 0
    %s19 = scalar_lea.sflag [#allocation4], 1
    %20 = vsyncpa %s19, 0
    %21 = vsyncpa [#allocation12], 0
    %s22 = scalar_lea.sflag [#allocation12], 1
    %23 = vsyncpa %s22, 0
    loop: start=0, step=1, limit=4
    $region2: #{convlstm_cell.1} parent=1 // loop_pre_header
      _
    $region3: #{convlstm_cell.1} parent=1 // loop_header
      %s25 = sphi 0, %s29
      %p26 = scmp.ge.s32.totalorder %s25, 4
      %s35 = sphi 0, %s37
      %s38 = sphi 0, %s35
      %s39 = sphi 0, %s38
      %s55 = sphi 0, %s39
      %s59 = sphi 0, %s59
      %s61 = sphi 0, %s59
      %s62 = sphi 0, %s61
      %s76 = sphi 0, %s62
      %s80 = sphi 0, %s80
      %s82 = sphi 0, %s80
      %s83 = sphi 0, %s82
      %s97 = sphi 0, %s83
      %s103 = sphi 0, %s105
      %s106 = sphi 0, %s103
      %s107 = sphi 0, %s106
      %s123 = sphi 0, %s107
      %s129 = sphi 0, %s131
      %s132 = sphi 0, %s129
      %s133 = sphi 0, %s132
      %s149 = sphi 0, %s133
      %s155 = sphi 0, %s157
      %s158 = sphi 0, %s155
      %s159 = sphi 0, %s158
      %s175 = sphi 0, %s159
    $region4: #{convlstm_cell.1} parent=1 // loop_header_branch
      %28 = sbr.rel (%p26) target = $region8
    $region5: #{convlstm_cell.1} parent=1 // loop_body
      %s30 = ssub.s32 %s25, 1
      %s31 = ssub.s32 %s25, 2
      %s32 = sadd.s32 %s25, 1
      %s33 = ssub.s32 %s25, %s32
      %p34 = scmp.eq.s32.totalorder %s33, 0
      %s36 = sadd.s32 %s35, 1
      %s37 = scalar_select %p34, %s35, %s36
      %p40 = pneg %p34
      %p41 = scmp.eq.s32.totalorder %s25, 1
      %p42 = por %p40, %p41
      %p43 = scmp.ne.s32.totalorder %s35, %s38
      %p44 = scmp.eq.s32.totalorder %s25, 0
      %p45 = por %p43, %p44
      %p46 = scmp.ne.s32.totalorder %s35, %s38
      %p47 = scmp.eq.s32.totalorder %s30, 1
      %p48 = por %p46, %p47
      %p49 = scmp.ne.s32.totalorder %s38, %s39
      %p50 = scmp.eq.s32.totalorder %s30, 0
      %p51 = por %p49, %p50
      %p52 = scmp.ne.s32.totalorder %s38, %s39
      %p53 = scmp.eq.s32.totalorder %s31, 1
      %p54 = por %p52, %p53
      %p56 = scmp.ne.s32.totalorder %s39, %s55
      %p57 = scmp.eq.s32.totalorder %s31, 0
      %p58 = por %p56, %p57
      %s60 = sadd.s32 %s59, 1
      %p63 = scmp.eq.s32.totalorder %s25, 1
      %p64 = scmp.ne.s32.totalorder %s59, %s61
      %p65 = scmp.eq.s32.totalorder %s25, 0
      %p66 = por %p64, %p65
      %p67 = scmp.ne.s32.totalorder %s59, %s61
      %p68 = scmp.eq.s32.totalorder %s30, 1
      %p69 = por %p67, %p68
      %p70 = scmp.ne.s32.totalorder %s61, %s62
      %p71 = scmp.eq.s32.totalorder %s30, 0
      %p72 = por %p70, %p71
      %p73 = scmp.ne.s32.totalorder %s61, %s62
      %p74 = scmp.eq.s32.totalorder %s31, 1
      %p75 = por %p73, %p74
      %p77 = scmp.ne.s32.totalorder %s62, %s76
      %p78 = scmp.eq.s32.totalorder %s31, 0
      %p79 = por %p77, %p78
      %s81 = sadd.s32 %s80, 1
      %p84 = scmp.eq.s32.totalorder %s25, 1
      %p85 = scmp.ne.s32.totalorder %s80, %s82
      %p86 = scmp.eq.s32.totalorder %s25, 0
      %p87 = por %p85, %p86
      %p88 = scmp.ne.s32.totalorder %s80, %s82
      %p89 = scmp.eq.s32.totalorder %s30, 1
      %p90 = por %p88, %p89
      %p91 = scmp.ne.s32.totalorder %s82, %s83
      %p92 = scmp.eq.s32.totalorder %s30, 0
      %p93 = por %p91, %p92
      %p94 = scmp.ne.s32.totalorder %s82, %s83
      %p95 = scmp.eq.s32.totalorder %s31, 1
      %p96 = por %p94, %p95
      %p98 = scmp.ne.s32.totalorder %s83, %s97
      %p99 = scmp.eq.s32.totalorder %s31, 0
      %p100 = por %p98, %p99
      %s101 = ssub.s32 %s25, %s32
      %p102 = scmp.eq.s32.totalorder %s101, 0
      %s104 = sadd.s32 %s103, 1
      %s105 = scalar_select %p102, %s103, %s104
      %p108 = pneg %p102
      %p109 = scmp.eq.s32.totalorder %s25, 1
      %p110 = por %p108, %p109
      %p111 = scmp.ne.s32.totalorder %s103, %s106
      %p112 = scmp.eq.s32.totalorder %s25, 0
      %p113 = por %p111, %p112
      %p114 = scmp.ne.s32.totalorder %s103, %s106
      %p115 = scmp.eq.s32.totalorder %s30, 1
      %p116 = por %p114, %p115
      %p117 = scmp.ne.s32.totalorder %s106, %s107
      %p118 = scmp.eq.s32.totalorder %s30, 0
      %p119 = por %p117, %p118
      %p120 = scmp.ne.s32.totalorder %s106, %s107
      %p121 = scmp.eq.s32.totalorder %s31, 1
      %p122 = por %p120, %p121
      %p124 = scmp.ne.s32.totalorder %s107, %s123
      %p125 = scmp.eq.s32.totalorder %s31, 0
      %p126 = por %p124, %p125
      %s127 = ssub.s32 %s25, %s32
      %p128 = scmp.eq.s32.totalorder %s127, 0
      %s130 = sadd.s32 %s129, 1
      %s131 = scalar_select %p128, %s129, %s130
      %p134 = pneg %p128
      %p135 = scmp.eq.s32.totalorder %s25, 1
      %p136 = por %p134, %p135
      %p137 = scmp.ne.s32.totalorder %s129, %s132
      %p138 = scmp.eq.s32.totalorder %s25, 0
      %p139 = por %p137, %p138
      %p140 = scmp.ne.s32.totalorder %s129, %s132
      %p141 = scmp.eq.s32.totalorder %s30, 1
      %p142 = por %p140, %p141
      %p143 = scmp.ne.s32.totalorder %s132, %s133
      %p144 = scmp.eq.s32.totalorder %s30, 0
      %p145 = por %p143, %p144
      %p146 = scmp.ne.s32.totalorder %s132, %s133
      %p147 = scmp.eq.s32.totalorder %s31, 1
      %p148 = por %p146, %p147
      %p150 = scmp.ne.s32.totalorder %s133, %s149
      %p151 = scmp.eq.s32.totalorder %s31, 0
      %p152 = por %p150, %p151
      %s153 = ssub.s32 %s25, %s32
      %p154 = scmp.eq.s32.totalorder %s153, 0
      %s156 = sadd.s32 %s155, 1
      %s157 = scalar_select %p154, %s155, %s156
      %p160 = pneg %p154
      %p161 = scmp.eq.s32.totalorder %s25, 1
      %p162 = por %p160, %p161
      %p163 = scmp.ne.s32.totalorder %s155, %s158
      %p164 = scmp.eq.s32.totalorder %s25, 0
      %p165 = por %p163, %p164
      %p166 = scmp.ne.s32.totalorder %s155, %s158
      %p167 = scmp.eq.s32.totalorder %s30, 1
      %p168 = por %p166, %p167
      %p169 = scmp.ne.s32.totalorder %s158, %s159
      %p170 = scmp.eq.s32.totalorder %s30, 0
      %p171 = por %p169, %p170
      %p172 = scmp.ne.s32.totalorder %s158, %s159
      %p173 = scmp.eq.s32.totalorder %s31, 1
      %p174 = por %p172, %p173
      %p176 = scmp.ne.s32.totalorder %s159, %s175
      %p177 = scmp.eq.s32.totalorder %s31, 0
      %p178 = por %p176, %p177
      %p179 = scmp.le.s32.totalorder 1, %s25
      %p180 = scmp.lt.s32.totalorder %s25, 3
      %p181 = pnand %p179, %p180
      %p182 = pneg %p181
      // Predicated region
      $region9: #{convlstm_cell.1} parent=5 // pred_check
        _
      $region10: #{convlstm_cell.1} parent=5 // pred_check_branch
        %184 = sbr.rel (%p181) target = $region12
      $region11: #{convlstm_cell.1} parent=5 // pred_region
        %s185 = ssub.s32 %s25, 1
        // Predicated region
        $region13: #{convlstm_cell.1} parent=11 // pred_check
          %p186 = pneg %p72
        $region14: #{convlstm_cell.1} parent=11 // pred_check_branch
          %188 = sbr.rel (%p186) target = $region16
        $region15: #{convlstm_cell.1} parent=11 // pred_region
          %s190 = ssub.s32 256, 256
          %191 = vsyncadd [#allocation6], %s190
          %s192 = sshll.u32 [#allocation5], 4
          %s193 = int_to_ptr.vmem [resolvable:$true] %s192
          %198 = dma.hbm_to_vmem [thread:$0]  %s1, 256, %s193, [#allocation6], 64, 64, 4
        $region16: #{convlstm_cell.1} parent=11 // pred_fallthru
          _
        // Predicated region
        $region17: #{convlstm_cell.1} parent=11 // pred_check
          %p199 = pneg %p93
        $region18: #{convlstm_cell.1} parent=11 // pred_check_branch
          %201 = sbr.rel (%p199) target = $region20
        $region19: #{convlstm_cell.1} parent=11 // pred_region
          %s203 = ssub.s32 512, 512
          %204 = vsyncadd [#allocation6], %s203
          %s205 = sshll.u32 [#allocation7], 4
          %s206 = int_to_ptr.vmem [resolvable:$true] %s205
          %211 = dma.hbm_to_vmem [thread:$0]  %s2, 512, %s206, [#allocation6], 128, 128, 8
        $region20: #{convlstm_cell.1} parent=11 // pred_fallthru
          _
      $region12: #{convlstm_cell.1} parent=5 // pred_fallthru
        _
      %p212 = scmp.lt.s32.totalorder %s25, 2
      // Predicated region
      $region21: #{convlstm_cell.1} parent=5 // pred_check
        %p213 = pneg %p212
      $region22: #{convlstm_cell.1} parent=5 // pred_check_branch
        %215 = sbr.rel (%p213) target = $region24
      $region23: #{convlstm_cell.1} parent=5 // pred_region
        // Predicated region
        $region25: #{convlstm_cell.1} parent=23 // pred_check
          %p216 = pneg %p45
        $region26: #{convlstm_cell.1} parent=23 // pred_check_branch
          %218 = sbr.rel (%p216) target = $region28
        $region27: #{convlstm_cell.1} parent=23 // pred_region
          %s219 = sand.u32 %s35, 1
          %s220 = scalar_lea.sflag [#allocation3], %s219
          %s221 = sand.u32 %s35, 1
          %s222 = smul.addr %s221, 112
          %s223 = scalar_lea.vmem [#allocation2], %s222
          %s225 = ssub.s32 1792, 1792
          %226 = vsyncadd %s220, %s225
          %s227 = smul.addr %s25, 28
          %s228 = smul.addr %s227, 64
          %s229 = scalar_lea.hbm %s0, %s228
          %s230 = sshll.u32 %s223, 4
          %s231 = int_to_ptr.vmem [resolvable:$true] %s230
          %236 = dma.hbm_to_vmem [thread:$0]  %s229, 1792, %s231, %s220, 128, 128, 8
        $region28: #{convlstm_cell.1} parent=23 // pred_fallthru
          _
        // Predicated region
        $region29: #{convlstm_cell.1} parent=23 // pred_check
          %p237 = pneg %p113
        $region30: #{convlstm_cell.1} parent=23 // pred_check_branch
          %239 = sbr.rel (%p237) target = $region32
        $region31: #{convlstm_cell.1} parent=23 // pred_region
          %s240 = sand.u32 %s103, 1
          %s241 = scalar_lea.sflag [#allocation9], %s240
          %s242 = sand.u32 %s103, 1
          %s243 = smul.addr %s242, 16
          %s244 = scalar_lea.vmem [#allocation8], %s243
          %s246 = ssub.s32 256, 256
          %247 = vsyncadd %s241, %s246
          %s248 = smul.addr %s25, 2
          %s249 = smul.addr %s248, 128
          %s250 = scalar_lea.hbm %s3, %s249
          %s252 = sshll.u32 %s244, 4
          %s253 = int_to_ptr.vmem [resolvable:$true] %s252
          %255 = dma.hbm_to_vmem [thread:$0]  %s250, 256, %s253, %s241
        $region32: #{convlstm_cell.1} parent=23 // pred_fallthru
          _
      $region24: #{convlstm_cell.1} parent=5 // pred_fallthru
        _
      %p256 = scmp.le.s32.totalorder 1, %s25
      %p257 = scmp.lt.s32.totalorder %s25, 3
      %p258 = pnand %p256, %p257
      %p259 = pneg %p258
      // Predicated region
      $region33: #{convlstm_cell.1} parent=5 // pred_check
        _
      $region34: #{convlstm_cell.1} parent=5 // pred_check_branch
        %261 = sbr.rel (%p258) target = $region36
      $region35: #{convlstm_cell.1} parent=5 // pred_region
        %s262 = ssub.s32 %s25, 1
        %s263 = sand.u32 %s38, 1
        %s264 = scalar_lea.sflag [#allocation3], %s263
        %s265 = sand.u32 %s38, 1
        %s266 = smul.addr %s265, 112
        %s267 = scalar_lea.vmem [#allocation2], %s266
        // Predicated region
        $region37: #{convlstm_cell.1} parent=35 // pred_check
          %p268 = pneg %p51
        $region38: #{convlstm_cell.1} parent=35 // pred_check_branch
          %270 = sbr.rel (%p268) target = $region40
        $region39: #{convlstm_cell.1} parent=35 // pred_region
          %271 = dma.done %s264, 1792
        $region40: #{convlstm_cell.1} parent=35 // pred_fallthru
          _
        // Predicated region
        $region41: #{convlstm_cell.1} parent=35 // pred_check
          %p272 = pneg %p72
        $region42: #{convlstm_cell.1} parent=35 // pred_check_branch
          %274 = sbr.rel (%p272) target = $region44
        $region43: #{convlstm_cell.1} parent=35 // pred_region
          %275 = dma.done [#allocation6], 256
        $region44: #{convlstm_cell.1} parent=35 // pred_fallthru
          _
        // Predicated region
        $region45: #{convlstm_cell.1} parent=35 // pred_check
          %p276 = pneg %p93
        $region46: #{convlstm_cell.1} parent=35 // pred_check_branch
          %278 = sbr.rel (%p276) target = $region48
        $region47: #{convlstm_cell.1} parent=35 // pred_region
          %279 = dma.done [#allocation6], 512
        $region48: #{convlstm_cell.1} parent=35 // pred_fallthru
          _
        %s280 = sand.u32 %s106, 1
        %s281 = scalar_lea.sflag [#allocation9], %s280
        %s282 = sand.u32 %s106, 1
        %s283 = smul.addr %s282, 16
        %s284 = scalar_lea.vmem [#allocation8], %s283
        // Predicated region
        $region49: #{convlstm_cell.1} parent=35 // pred_check
          %p285 = pneg %p119
        $region50: #{convlstm_cell.1} parent=35 // pred_check_branch
          %287 = sbr.rel (%p285) target = $region52
        $region51: #{convlstm_cell.1} parent=35 // pred_region
          %288 = dma.done %s281, 256
        $region52: #{convlstm_cell.1} parent=35 // pred_fallthru
          _
        %s289 = sand.u32 %s38, 1
        %s290 = scalar_lea.sflag [#allocation3], %s289
        %s291 = sand.u32 %s38, 1
        %s292 = smul.addr %s291, 112
        %s293 = scalar_lea.vmem [#allocation2], %s292
        %p294 = pneg %p51
        %p295 = pneg %p48
        %p296 = pneg %p72
        %p297 = pneg %p69
        %p298 = pneg %p93
        %p299 = pneg %p90
        %s300 = sand.u32 %s106, 1
        %s301 = scalar_lea.sflag [#allocation9], %s300
        %s302 = sand.u32 %s106, 1
        %s303 = smul.addr %s302, 16
        %s304 = scalar_lea.vmem [#allocation8], %s303
        %p305 = pneg %p119
        %p306 = pneg %p116
        %p307 = pneg %p145
        %p308 = pneg %p142
        %s309 = sand.u32 %s132, 1
        %s310 = scalar_lea.sflag [#allocation4], %s309
        %s311 = sand.u32 %s132, 1
        %s312 = smul.addr %s311, 16
        %s313 = scalar_lea.vmem [#allocation10], %s312
        %p314 = pneg %p171
        %p315 = pneg %p168
        %s316 = sand.u32 %s158, 1
        %s317 = scalar_lea.sflag [#allocation12], %s316
        %s318 = sand.u32 %s158, 1
        %s319 = smul.addr %s318, 16
        %s320 = scalar_lea.vmem [#allocation11], %s319
        %v322 = vld [vmem:[#allocation5] sm:$0xf]
        %v323 = vld [vmem:[#allocation5 + $0x4] sm:$0xf]
        %v324 = vld [vmem:[#allocation5 + $0x8] sm:$0xf]
        %v325 = vld [vmem:[#allocation5 + $0xc] sm:$0xf]
        %v326 = vld [vmem:[%s267] sm:$0xff]
        %v327 = vld [vmem:[%s267 + $0x8] sm:$0xff]
        %v328 = vld [vmem:[%s267 + $0x10] sm:$0xff]
        %v329 = vld [vmem:[%s267 + $0x18] sm:$0xff]
        %v330 = vld [vmem:[%s267 + $0x20] sm:$0xff]
        %v331 = vld [vmem:[%s267 + $0x28] sm:$0xff]
        %v332 = vld [vmem:[%s267 + $0x30] sm:$0xff]
        %v333 = vld [vmem:[%s267 + $0x38] sm:$0xff]
        %v334 = vld [vmem:[%s267 + $0x40] sm:$0xff]
        %v335 = vld [vmem:[%s267 + $0x48] sm:$0xff]
        %v336 = vld [vmem:[%s267 + $0x50] sm:$0xff]
        %v337 = vld [vmem:[%s267 + $0x58] sm:$0xff]
        %v338 = vld [vmem:[%s267 + $0x60] sm:$0xff]
        %v339 = vld [vmem:[%s267 + $0x68] sm:$0x33]
        %v340 = vld [vmem:[#allocation7] sm:$0xff]
        %v341 = vld [vmem:[#allocation7 + $0x8] sm:$0xff]
        %v342 = vld [vmem:[#allocation7 + $0x10] sm:$0xff]
        %v343 = vld [vmem:[#allocation7 + $0x18] sm:$0xff]
        %345 = vset.pattern.permute.xlu0 0
        %346 = vperm.xlu0 %345, %v340
        %v347 = vpop.permute.xlu0 %346
        %350 = vset.pattern.permute.xlu0 0
        %351 = vperm.xlu0 %350, %v341
        %v352 = vpop.permute.xlu0 %351
        %355 = vset.pattern.permute.xlu0 0
        %356 = vperm.xlu0 %355, %v342
        %v357 = vpop.permute.xlu0 %356
        %360 = vset.pattern.permute.xlu0 0
        %361 = vperm.xlu0 %360, %v343
        %v362 = vpop.permute.xlu0 %361
        %v368 = vunpack.c.l.b16 %v322
        %v369 = vunpack.c.l.b16 %v323
        %v370 = vunpack.c.l.b16 %v324
        %v371 = vunpack.c.l.b16 %v325
        %v372 = vpack.c.b16 %v369, %v368
        %v373 = vpack.c.b16 %v371, %v370
        %v388 = vunpack.c.l.b16 %v326
        %v389 = vunpack.c.h.b16 %v326
        %v390 = vunpack.c.l.b16 %v327
        %v391 = vunpack.c.h.b16 %v327
        %v392 = vunpack.c.l.b16 %v328
        %v393 = vunpack.c.h.b16 %v328
        %v394 = vunpack.c.l.b16 %v329
        %v395 = vunpack.c.h.b16 %v329
        %v396 = vunpack.c.l.b16 %v330
        %v397 = vunpack.c.h.b16 %v330
        %v398 = vunpack.c.l.b16 %v331
        %v399 = vunpack.c.h.b16 %v331
        %v400 = vunpack.c.l.b16 %v332
        %v401 = vunpack.c.h.b16 %v332
        %v402 = vunpack.c.l.b16 %v333
        %v403 = vunpack.c.h.b16 %v333
        %v404 = vunpack.c.l.b16 %v334
        %v405 = vunpack.c.h.b16 %v334
        %v406 = vunpack.c.l.b16 %v335
        %v407 = vunpack.c.h.b16 %v335
        %v408 = vunpack.c.l.b16 %v336
        %v409 = vunpack.c.h.b16 %v336
        %v410 = vunpack.c.l.b16 %v337
        %v411 = vunpack.c.h.b16 %v337
        %v412 = vunpack.c.l.b16 %v338
        %v413 = vunpack.c.h.b16 %v338
        %v414 = vunpack.c.l.b16 %v339
        %v415 = vunpack.c.h.b16 %v339
        %v416 = vpack.c.b16 %v390, %v388
        %v417 = vpack.c.b16 %v391, %v389
        %v418 = vpack.c.b16 %v394, %v392
        %v419 = vpack.c.b16 %v395, %v393
        %v420 = vpack.c.b16 %v398, %v396
        %v421 = vpack.c.b16 %v399, %v397
        %v422 = vpack.c.b16 %v402, %v400
        %v423 = vpack.c.b16 %v403, %v401
        %v424 = vpack.c.b16 %v406, %v404
        %v425 = vpack.c.b16 %v407, %v405
        %v426 = vpack.c.b16 %v410, %v408
        %v427 = vpack.c.b16 %v411, %v409
        %v428 = vpack.c.b16 %v414, %v412
        %v429 = vpack.c.b16 %v415, %v413
        %vm442 = vcmask 883712
        %v444 = vsel %vm442, %v372, 0
        %v447 = vsel %vm442, %v373, 0
        %vm449 = vcmask 1045504
        %v451 = vsel %vm449, %v428, 0
        %v454 = vsel %vm449, %v429, 0
        %456 = vmatprep.subr.bf16.mxu0 %v417
        %457 = vmatpush1.bf16.msra.mxu0 %v416
        %458 = vmatprep.subr.bf16.mxu0 %v419
        %459 = vmatpush1.bf16.msra.mxu0 %v418
        %460 = vmatprep.subr.bf16.mxu0 %v421
        %461 = vmatpush1.bf16.msra.mxu0 %v420
        %462 = vmatprep.subr.bf16.mxu0 %v423
        %463 = vmatpush1.bf16.msra.mxu0 %v422
        %464 = vmatprep.subr.bf16.mxu0 %v425
        %465 = vmatpush1.bf16.msra.mxu0 %v424
        %466 = vmatprep.subr.bf16.mxu0 %v427
        %467 = vmatpush1.bf16.msra.mxu0 %v426
        %468 = vmatprep.subr.bf16.mxu0 %v454
        %469 = vmatpush1.bf16.msra.mxu0 %v451
        %470 = vmatprep.subr.bf16.mxu0 0
        %471 = vmatpush1.bf16.msra.mxu0 0
        %472 = vmatprep.subr.bf16.mxu0 0
        %473 = vmatpush1.bf16.msra.mxu0 0
        %474 = vmatprep.subr.bf16.mxu0 0
        %475 = vmatpush1.bf16.msra.mxu0 0
        %476 = vmatprep.subr.bf16.mxu0 0
        %477 = vmatpush1.bf16.msra.mxu0 0
        %478 = vmatprep.subr.bf16.mxu0 0
        %479 = vmatpush1.bf16.msra.mxu0 0
        %480 = vmatprep.subr.bf16.mxu0 0
        %481 = vmatpush1.bf16.msra.mxu0 0
        %482 = vmatprep.subr.bf16.mxu0 0
        %483 = vmatpush1.bf16.msra.mxu0 0
        %484 = vmatprep.subr.bf16.mxu0 0
        %485 = vmatpush1.bf16.msra.mxu0 0
        %486 = vmatprep.subr.bf16.mxu0 0
        %487 = vmatpush1.bf16.msra.mxu0 0
        %488 = vmatprep.mubr.bf16.mxu0 0
        %489 = vmatmul.mubr.bf16.gmra.mrb[0].mxu0 %v444
        %v490 = vpop.f32.mrb[0].mxu0
        %v491 = vadd.f32 %v347, %v490
        %v492 = vpop.f32.mrb[0].mxu0
        %v493 = vadd.f32 %v347, %v492
        %v494 = vpop.f32.mrb[0].mxu0
        %v495 = vadd.f32 %v352, %v494
        %v496 = vpop.f32.mrb[0].mxu0
        %v497 = vadd.f32 %v352, %v496
        %498 = vmatprep.mubr.bf16.mxu0 0
        %499 = vmatmul.mubr.bf16.gmra.mrb[0].mxu0 %v447
        %v500 = vpop.f32.mrb[0].mxu0
        %v501 = vadd.f32 %v357, %v500
        %v502 = vpop.f32.mrb[0].mxu0
        %v503 = vadd.f32 %v357, %v502
        %v504 = vpop.f32.mrb[0].mxu0
        %v505 = vadd.f32 %v362, %v504
        %v506 = vpop.f32.mrb[0].mxu0
        %v507 = vadd.f32 %v362, %v506
        %508 = vdwg.mxu0
        %v509 = vxor.u32 %v491, 2147483648
        %v510 = vxor.u32 %v493, 2147483648
        %v511 = vxor.u32 %v495, 2147483648
        %v512 = vxor.u32 %v497, 2147483648
        %v513 = vxor.u32 %v501, 2147483648
        %v514 = vxor.u32 %v503, 2147483648
        %v515 = vmul.f32 %v509, 1.442695
        %v516 = vpow.pop %v515
        %v517 = vmul.f32 %v510, 1.442695
        %v518 = vpow.pop %v517
        %v519 = vmul.f32 %v511, 1.442695
        %v520 = vpow.pop %v519
        %v521 = vmul.f32 %v512, 1.442695
        %v522 = vpow.pop %v521
        %v523 = vmul.f32 %v513, 1.442695
        %v524 = vpow.pop %v523
        %v525 = vmul.f32 %v514, 1.442695
        %v526 = vpow.pop %v525
        %v527 = vadd.f32 %v516, 1.0
        %v528 = vadd.f32 %v518, 1.0
        %v529 = vadd.f32 %v520, 1.0
        %v530 = vadd.f32 %v522, 1.0
        %v531 = vadd.f32 %v524, 1.0
        %v532 = vadd.f32 %v526, 1.0
        %v533 = vrcp.pop %v527
        %v534 = vmul.f32 1.0, %v533
        %v535 = vrcp.pop %v528
        %v536 = vmul.f32 1.0, %v535
        %v537 = vrcp.pop %v529
        %v538 = vmul.f32 1.0, %v537
        %v539 = vrcp.pop %v530
        %v540 = vmul.f32 1.0, %v539
        %v541 = vrcp.pop %v531
        %v542 = vmul.f32 1.0, %v541
        %v543 = vrcp.pop %v532
        %v544 = vmul.f32 1.0, %v543
        %v545 = vtanh.pop %v505
        %v546 = vtanh.pop %v507
        %v547 = vld [vmem:[%s284] sm:$0xff]
        %v548 = vld [vmem:[%s284 + $0x8] sm:$0xff]
        %v549 = vmul.f32 %v538, %v547
        %v550 = vmul.f32 %v540, %v548
        %v551 = vmul.f32 %v534, %v545
        %v552 = vmul.f32 %v536, %v546
        %v553 = vadd.f32 %v549, %v551
        %v554 = vadd.f32 %v550, %v552
        %v555 = vtanh.pop %v553
        %v556 = vtanh.pop %v554
        %v557 = vmul.f32 %v542, %v555
        %v558 = vmul.f32 %v544, %v556
        %559 = vst [vmem:[%s313] sm:$0xff] %v557
        %560 = vst [vmem:[%s313 + $0x8] sm:$0xff] %v558
        %561 = vst [vmem:[%s320] sm:$0xff] %v553
        %562 = vst [vmem:[%s320 + $0x8] sm:$0xff] %v554
        %s563 = sand.u32 %s132, 1
        %s564 = scalar_lea.sflag [#allocation4], %s563
        %s565 = sand.u32 %s132, 1
        %s566 = smul.addr %s565, 16
        %s567 = scalar_lea.vmem [#allocation10], %s566
        %s568 = sand.u32 %s158, 1
        %s569 = scalar_lea.sflag [#allocation12], %s568
        %s570 = sand.u32 %s158, 1
        %s571 = smul.addr %s570, 16
        %s572 = scalar_lea.vmem [#allocation11], %s571
        // Predicated region
        $region53: #{convlstm_cell.1} parent=35 // pred_check
          %p573 = pneg %p142
        $region54: #{convlstm_cell.1} parent=35 // pred_check_branch
          %575 = sbr.rel (%p573) target = $region56
        $region55: #{convlstm_cell.1} parent=35 // pred_region
          %s577 = ssub.s32 256, 256
          %578 = vsyncadd %s564, %s577
          %s579 = smul.addr %s30, 2
          %s580 = smul.addr %s579, 128
          %s581 = scalar_lea.hbm %s4, %s580
          %s583 = sshll.u32 %s567, 4
          %s584 = int_to_ptr.vmem [resolvable:$true] %s583
          %586 = dma.vmem_to_hbm [thread:$0]  %s584, 256, %s581, %s564
        $region56: #{convlstm_cell.1} parent=35 // pred_fallthru
          _
        // Predicated region
        $region57: #{convlstm_cell.1} parent=35 // pred_check
          %p587 = pneg %p168
        $region58: #{convlstm_cell.1} parent=35 // pred_check_branch
          %589 = sbr.rel (%p587) target = $region60
        $region59: #{convlstm_cell.1} parent=35 // pred_region
          %s591 = ssub.s32 256, 256
          %592 = vsyncadd %s569, %s591
          %s593 = smul.addr %s30, 2
          %s594 = smul.addr %s593, 128
          %s595 = scalar_lea.hbm %s5, %s594
          %s597 = sshll.u32 %s572, 4
          %s598 = int_to_ptr.vmem [resolvable:$true] %s597
          %600 = dma.vmem_to_hbm [thread:$0]  %s598, 256, %s595, %s569
        $region60: #{convlstm_cell.1} parent=35 // pred_fallthru
          _
      $region36: #{convlstm_cell.1} parent=5 // pred_fallthru
        _
      %p601 = scmp.le.s32.totalorder 2, %s25
      // Predicated region
      $region61: #{convlstm_cell.1} parent=5 // pred_check
        %p602 = pneg %p601
      $region62: #{convlstm_cell.1} parent=5 // pred_check_branch
        %604 = sbr.rel (%p602) target = $region64
      $region63: #{convlstm_cell.1} parent=5 // pred_region
        %s605 = ssub.s32 %s25, 2
        // Predicated region
        $region65: #{convlstm_cell.1} parent=63 // pred_check
          %p606 = pneg %p148
        $region66: #{convlstm_cell.1} parent=63 // pred_check_branch
          %608 = sbr.rel (%p606) target = $region68
        $region67: #{convlstm_cell.1} parent=63 // pred_region
          %s609 = sand.u32 %s133, 1
          %s610 = scalar_lea.sflag [#allocation4], %s609
          %s611 = sand.u32 %s133, 1
          %s612 = smul.addr %s611, 16
          %s613 = scalar_lea.vmem [#allocation10], %s612
          %614 = dma.done %s610, 256
        $region68: #{convlstm_cell.1} parent=63 // pred_fallthru
          _
        // Predicated region
        $region69: #{convlstm_cell.1} parent=63 // pred_check
          %p615 = pneg %p174
        $region70: #{convlstm_cell.1} parent=63 // pred_check_branch
          %617 = sbr.rel (%p615) target = $region72
        $region71: #{convlstm_cell.1} parent=63 // pred_region
          %s618 = sand.u32 %s159, 1
          %s619 = scalar_lea.sflag [#allocation12], %s618
          %s620 = sand.u32 %s159, 1
          %s621 = smul.addr %s620, 16
          %s622 = scalar_lea.vmem [#allocation11], %s621
          %623 = dma.done %s619, 256
        $region72: #{convlstm_cell.1} parent=63 // pred_fallthru
          _
      $region64: #{convlstm_cell.1} parent=5 // pred_fallthru
        _
    $region6: #{convlstm_cell.1} parent=1 // loop_footer
      %s29 = sadd.s32 1, %s25
    $region7: #{convlstm_cell.1} parent=1 // loop_footer_branch
      %24 = sbr.rel target = $region3
    $region8: #{convlstm_cell.1} parent=1 // loop_exit
      _
    %624 = vsyncpa [#allocation3], 1
    %s625 = scalar_lea.sflag [#allocation3], 1
    %626 = vsyncpa %s625, 1
    %627 = vsyncpa [#allocation6], 1
    %628 = vsyncpa [#allocation9], 1
    %s629 = scalar_lea.sflag [#allocation9], 1
    %630 = vsyncpa %s629, 1
    %631 = vsyncpa [#allocation4], 1
    %s632 = scalar_lea.sflag [#allocation4], 1
    %633 = vsyncpa %s632, 1
    %634 = vsyncpa [#allocation12], 1
    %s635 = scalar_lea.sflag [#allocation12], 1
    %636 = vsyncpa %s635, 1

</llo_original>
